<compile_context>
chip_gen: v7x
topology: tpu7x:2x2x1
jax: 0.10.0
libtpu: 0.0.40
codegen_flags: <defaults>
</compile_context>

<pallas_src>
import functools

import jax
import jax.numpy as jnp
import numpy as np
from jax import lax
from jax.experimental import pallas as pl
from jax.experimental.pallas import tpu as pltpu


def _elu(x):
    # F.elu with alpha=1.0 (elementwise path kept in f32).
    return jnp.where(x > 0, x, jnp.expm1(x))


# ---------------------------------------------------------------------------
# Linear projection kernel: y = x @ W_t + b, with W_t already (K, N_out).
#   * tiled over rows (M) and output features (N_out), megacore sharding
#   * operands passed to pallas_call already in the compute dtype (bf16 halves
#     the HBM DMA for the bandwidth-bound v / output projections)
#   * f32 accumulation, f32 bias add, cast to out dtype on store
# ---------------------------------------------------------------------------
def _linear_kernel(x_ref, wt_ref, b_ref, o_ref):
    y = lax.dot_general(x_ref[...], wt_ref[...], (((1,), (0,)), ((), ())),
                        preferred_element_type=jnp.float32)
    o_ref[...] = (y + b_ref[...]).astype(o_ref.dtype)


def linear_pallas(x2d, w_t, b=None, *, compute_dtype=jnp.bfloat16,
                  out_dtype=jnp.float32, tm=512, tn=512):
    M, K = x2d.shape
    N = w_t.shape[1]
    if b is None:
        b = jnp.zeros((N,), jnp.float32)
    b2 = b.reshape(1, N).astype(jnp.float32)
    x_c = x2d.astype(compute_dtype)
    w_c = w_t.astype(compute_dtype)
    tm = min(tm, M)
    tn = min(tn, N)
    grid = (pl.cdiv(M, tm), pl.cdiv(N, tn))
    in_b = 2 if compute_dtype == jnp.bfloat16 else 4
    out_b = 2 if out_dtype == jnp.bfloat16 else 4
    cost = pl.CostEstimate(flops=2 * M * K * N, transcendentals=0,
                           bytes_accessed=in_b * (M * K + K * N)
                           + 4 * N + out_b * M * N)
    return pl.pallas_call(
        _linear_kernel,
        out_shape=jax.ShapeDtypeStruct((M, N), out_dtype),
        grid=grid,
        in_specs=[
            pl.BlockSpec((tm, K), lambda i, j: (i, 0)),
            pl.BlockSpec((K, tn), lambda i, j: (0, j)),
            pl.BlockSpec((1, tn), lambda i, j: (0, j)),
        ],
        out_specs=pl.BlockSpec((tm, tn), lambda i, j: (i, j)),
        compiler_params=pltpu.CompilerParams(
            dimension_semantics=("parallel", "parallel"),
            vmem_limit_bytes=32 * 1024 * 1024),
        cost_estimate=cost,
    )(x_c, w_c, b2)


# ---------------------------------------------------------------------------
# Infini-attention core kernel: one batch element per grid step; heads are
# processed by a statically unrolled loop and the per-head outputs are
# concatenated into one lane-dense (N, H*D) store.
# Inputs  (per step): q,k (N,H,D) f32   v (N,H,D) bf16   mem (H,D,D) f32
#                     norm (H,N,1) f32  gate_w (seq_len,D) f32
#                     gate scalars (2,) f32 in SMEM
# Outputs (per step): out (N, H*D) bf16, new_mem (H,D,D) f32, new_norm (H,N) f32
# ---------------------------------------------------------------------------
def _infini_attn_kernel(q_ref, k_ref, v_ref, mem_ref, norm_ref, gate_w_ref,
                        gate_sc_ref, o_ref, new_mem_ref, new_norm_ref,
                        *, scale, heads):
    # gating scalars precomputed in the wrapper, read from SMEM.
    g_local = gate_sc_ref[0]          # 1 - sigmoid(local_memory_scalar)
    g_long = gate_sc_ref[1]           # sigmoid(long_term_memory_scalar)
    gate_wb = gate_w_ref[...].astype(jnp.bfloat16)   # (seq_len==N, D), hoisted

    # TODO(synk): for v7x (64 MiB VMEM, 2 TCs) and very large N, move heads
    # onto the grid and/or KV-tile the softmax instead of keeping all heads
    # resident with a fully materialized (N, N) score matrix.
    outs = []
    norm_rows = []
    for h in range(heads):            # static unrolled loop over heads
        q = q_ref[:, h, :]            # (N, D) f32
        k = k_ref[:, h, :]            # (N, D) f32
        v = v_ref[:, h, :]            # (N, D) bf16
        mem = mem_ref[h]              # (D, D) f32
        norm = norm_ref[h]            # (N, 1) f32
        kb = k.astype(jnp.bfloat16)
        memb = mem.astype(jnp.bfloat16)
        vf = v.astype(jnp.float32)

        # --- local attention: softmax(q k^T * scale) @ v, gated ------------
        # scale folded into q; g_local folded into the row reciprocal so the
        # (N, N) matrix is never rescaled elementwise. Contraction on dim 1 of
        # both operands -> no in-kernel k.T transpose.
        qb = (q * scale).astype(jnp.bfloat16)
        sim = lax.dot_general(qb, kb, (((1,), (1,)), ((), ())),
                              preferred_element_type=jnp.float32)      # (N, N)
        sim = sim - jnp.max(sim, axis=-1, keepdims=True)
        e = jnp.exp(sim)
        inv = pl.reciprocal(jnp.sum(e, axis=-1, keepdims=True),
                            approx=True) * g_local                     # (N, 1)
        o_local = lax.dot_general(e.astype(jnp.bfloat16), v,
                                  (((1,), (0,)), ((), ())),
                                  preferred_element_type=jnp.float32) * inv

        # --- long-term memory read, re-associated ---------------------------
        #   (mem_q @ gate_w^T) @ v  ==  mem_q @ (gate_w^T @ v)   (D x D)
        elu_q = _elu(q)
        mem_q = lax.dot_general(elu_q.astype(jnp.bfloat16), memb,
                                (((1,), (0,)), ((), ())),
                                preferred_element_type=jnp.float32)
        mem_q = mem_q / (elu_q * norm)         # exact f32 divide (sensitive)
        gv = lax.dot_general(gate_wb, v, (((0,), (0,)), ((), ())),
                             preferred_element_type=jnp.float32)       # (D, D)
        gv = (g_long * gv).astype(jnp.bfloat16)
        o_long = lax.dot_general(mem_q.astype(jnp.bfloat16), gv,
                                 (((1,), (0,)), ((), ())),
                                 preferred_element_type=jnp.float32)
        outs.append((o_local + o_long).astype(o_ref.dtype))

        # --- delta-rule long-term memory update (PyTorch side effect,
        #     returned as outputs; matches the broadcasted (B,H,...) result) --
        elu_k = _elu(k)
        kv_read = lax.dot_general(elu_k.astype(jnp.bfloat16), memb,
                                  (((1,), (0,)), ((), ())),
                                  preferred_element_type=jnp.float32)
        v_term = vf - kv_read / (elu_k * norm)   # exact f32 divide (sensitive)
        # elu_k^T @ v_term via contraction on dim 0 of both -> no .T transpose.
        # TODO(synk): for long recurrent rollouts consider f32 MXU operands
        # here to bound drift in the persistent memory state.
        new_mem_ref[h] = mem + lax.dot_general(
            elu_k.astype(jnp.bfloat16), v_term.astype(jnp.bfloat16),
            (((0,), (0,)), ((), ())), preferred_element_type=jnp.float32)
        # row-sum of elu_k as a ones-matvec so N lands on the lane axis.
        ones_row = jnp.ones((1, elu_k.shape[1]), jnp.float32)
        norm_rows.append(lax.dot_general(ones_row, elu_k,
                                         (((1,), (1,)), ((), ())),
                                         preferred_element_type=jnp.float32))

    # single lane-dense stores (no masked width-D partial stores per head)
    o_ref[...] = jnp.concatenate(outs, axis=-1)            # (N, H*D) bf16
    new_norm_ref[...] = jnp.concatenate(norm_rows, axis=0)  # (H, N) f32


def infini_attention_core(q, k, v, mem, norm, gate_w, gate_scalars, scale):
    B, N, H, D = q.shape
    seq_len = gate_w.shape[0]
    kernel = functools.partial(_infini_attn_kernel, scale=scale, heads=H)
    cost = pl.CostEstimate(
        flops=2 * B * H * (2 * N * N * D + 5 * N * D * D + N * D),
        transcendentals=B * H * (N * N + 2 * N * D),
        bytes_accessed=(4 * 2 * B * N * H * D            # q, k f32
                        + 2 * 2 * B * N * H * D          # v in + out bf16
                        + 4 * (H * D * D + B * H * D * D
                               + H * N + B * H * N + seq_len * D + 2)))
    out_shape = (
        jax.ShapeDtypeStruct((B, N, H * D), jnp.bfloat16),  # attention output
        jax.ShapeDtypeStruct((B, H, D, D), jnp.float32),    # new memory
        jax.ShapeDtypeStruct((B, H, N), jnp.float32),       # new norm
    )
    return pl.pallas_call(
        kernel,
        out_shape=out_shape,
        grid=(B,),
        in_specs=[
            pl.BlockSpec((None, N, H, D), lambda b: (b, 0, 0, 0)),   # q
            pl.BlockSpec((None, N, H, D), lambda b: (b, 0, 0, 0)),   # k
            pl.BlockSpec((None, N, H, D), lambda b: (b, 0, 0, 0)),   # v (bf16)
            pl.BlockSpec((None, H, D, D), lambda b: (0, 0, 0, 0)),   # memory
            pl.BlockSpec((None, H, N, 1), lambda b: (0, 0, 0, 0)),   # mem norm
            pl.BlockSpec((seq_len, D), lambda b: (0, 0)),            # gate W
            pl.BlockSpec(memory_space=pltpu.MemorySpace.SMEM),       # scalars
        ],
        out_specs=(
            pl.BlockSpec((None, N, H * D), lambda b: (b, 0, 0)),
            pl.BlockSpec((None, H, D, D), lambda b: (b, 0, 0, 0)),
            pl.BlockSpec((None, H, N), lambda b: (b, 0, 0)),
        ),
        compiler_params=pltpu.CompilerParams(
            dimension_semantics=("parallel",),
            vmem_limit_bytes=48 * 1024 * 1024),
        cost_estimate=cost,
    )(q, k, v, mem, norm, gate_w, gate_scalars)


# ---------------------------------------------------------------------------
# Full forward (mask=None path).
# ---------------------------------------------------------------------------
def infini_attention_forward(params, q_in, k_in, v_in):
    B, N, dim = q_in.shape
    H = params["heads"]
    D = params["dim_head"]
    seq_len = params["w_gate"].shape[0]
    assert seq_len == N and dim == D, "module constraints (see header)"
    scale = D ** (-0.5)

    # In real use store the projection weights pre-transposed; here they are
    # transposed once per call outside the kernels.
    def proj(x, w, compute_dtype, out_dtype):
        y = linear_pallas(x.reshape(B * N, dim), jnp.transpose(w),
                          compute_dtype=compute_dtype, out_dtype=out_dtype)
        return y.reshape(B, N, H, D)          # contiguous reshape, no transpose

    # q/k feed the 1/(elu(.)*norm) denominators -> keep their MXU path in f32.
    q = proj(q_in, params["w_q"], jnp.float32, jnp.float32)
    k = proj(k_in, params["w_k"], jnp.float32, jnp.float32)
    # v is consumed as a bf16 MXU operand everywhere -> bf16 DMA in and out.
    v = proj(v_in, params["w_v"], jnp.bfloat16, jnp.bfloat16)

    gate_scalars = jnp.stack([
        1.0 - jax.nn.sigmoid(params["local_memory_scalar"]),
        jax.nn.sigmoid(params["long_term_memory_scalar"]),
    ]).astype(jnp.float32)

    out_bnf, new_mem, new_norm = infini_attention_core(
        q, k, v, params["long_term_memory"], params["long_term_memory_norm"],
        params["w_gate"], gate_scalars, scale)

    out2d = out_bnf.reshape(B * N, H * D)     # already lane-dense, contiguous
    out = linear_pallas(out2d, jnp.transpose(params["w_out"]), params["b_out"],
                        compute_dtype=jnp.bfloat16,
                        out_dtype=jnp.float32).reshape(B, N, dim)
    # PyTorch stores elu(k).sum(-1) -> (B, H, N)
    return out, new_mem, new_norm


# ---------------------------------------------------------------------------
# Pure-JAX reference of the PyTorch forward (for verification).
# ---------------------------------------------------------------------------
def reference_forward(params, q_in, k_in, v_in):
    hp = jax.lax.Precision.HIGHEST
    B, N, dim = q_in.shape
    H, D = params["heads"], params["dim_head"]
    scale = D ** (-0.5)

    def proj(x, w):
        y = jnp.matmul(x, w.T, precision=hp)
        return y.reshape(B, N, H, D).transpose(0, 2, 1, 3)

    q, k, v = (proj(q_in, params["w_q"]), proj(k_in, params["w_k"]),
               proj(v_in, params["w_v"]))
    mem, norm = params["long_term_memory"], params["long_term_memory_norm"]

    sim = jnp.matmul(q, jnp.swapaxes(k, -2, -1), precision=hp) * scale
    local = jax.nn.softmax(sim, axis=-1)
    local = (1.0 - jax.nn.sigmoid(params["local_memory_scalar"])) * local

    elu_q = _elu(q)
    mem_q = jnp.matmul(elu_q, mem, precision=hp) / (elu_q * norm)
    gated = jax.nn.sigmoid(params["long_term_memory_scalar"]) * jnp.matmul(
        mem_q, params["w_gate"].T, precision=hp)
    attn = local + gated

    elu_k = _elu(k)
    v_term = v - jnp.matmul(elu_k, mem, precision=hp) / (elu_k * norm)
    new_mem = mem + jnp.matmul(jnp.swapaxes(elu_k, -2, -1), v_term, precision=hp)
    new_norm = elu_k.sum(-1)

    out = jnp.matmul(attn, v, precision=hp)
    out = out.transpose(0, 2, 1, 3).reshape(B, N, H * D)
    out = jnp.matmul(out, params["w_out"].T, precision=hp) + params["b_out"]
    return out, new_mem, new_norm


def _check(name, got, want, tol):
    got, want = np.asarray(got), np.asarray(want)
    assert got.shape == want.shape, (name, got.shape, want.shape)
    assert np.isfinite(got).all(), name
    denom = max(float(np.max(np.abs(want))), 1e-6)
    err = float(np.max(np.abs(got - want))) / denom
    assert err < tol, f"{name}: normalized max error {err:.3e}"


if __name__ == "__main__":
    # small shapes consistent with the module: dim == dim_head, n == seq_len
    B, N = 2, 16
    heads, dim_head = 2, 32
    dim = dim_head
    seq_len = N
    inner = heads * dim_head

    keys = jax.random.split(jax.random.PRNGKey(0), 12)

    def lin_init(key, out_f, in_f):
        bound = 1.0 / np.sqrt(in_f)
        return jax.random.uniform(key, (out_f, in_f), jnp.float32, -bound, bound)

    params = {
        "heads": heads,
        "dim_head": dim_head,
        "w_q": lin_init(keys[0], inner, dim),
        "w_k": lin_init(keys[1], inner, dim),
        "w_v": lin_init(keys[2], inner, dim),
        "w_out": lin_init(keys[3], dim, inner),
        "b_out": jax.random.uniform(keys[4], (dim,), jnp.float32,
                                    -1.0 / np.sqrt(inner), 1.0 / np.sqrt(inner)),
        "w_gate": lin_init(keys[5], seq_len, dim),
        "local_memory_scalar": jnp.float32(1.0),
        "long_term_memory_scalar": jnp.float32(1.0),
        # deterministic non-zero memory state (zeros as in __init__ give 0/0)
        "long_term_memory": 0.05 * jax.random.normal(
            keys[6], (1, heads, dim_head, dim_head), jnp.float32),
        "long_term_memory_norm": jax.random.uniform(
            keys[7], (1, heads, seq_len, 1), jnp.float32, 0.8, 1.2),
    }

    q_in = jax.random.normal(keys[8], (B, N, dim), jnp.float32)
    k_in = jax.random.normal(keys[9], (B, N, dim), jnp.float32)
    v_in = jax.random.normal(keys[10], (B, N, dim), jnp.float32)

    out, new_mem, new_norm = infini_attention_forward(params, q_in, k_in, v_in)
    jax.block_until_ready((out, new_mem, new_norm))

    ref_out, ref_mem, ref_norm = reference_forward(params, q_in, k_in, v_in)
    # tolerance reflects bf16 MXU operands vs the f32 reference
    _check("out", out, ref_out, tol=2e-2)
    _check("new_long_term_memory", new_mem, ref_mem, tol=2e-2)
    _check("new_long_term_memory_norm", new_norm, ref_norm, tol=2e-2)

    print("KERNEL_OK")
</pallas_src>

<mosaic_0001>
module attributes {stable_mosaic.version = 11 : i64} {
  func.func @_linear_kernel(%arg0: i32, %arg1: i32, %arg2: memref<32x32xf32, #tpu.memory_space<vmem>>, %arg3: memref<32x64xf32, #tpu.memory_space<vmem>>, %arg4: memref<1x64xf32, #tpu.memory_space<vmem>>, %arg5: memref<32x64xf32, #tpu.memory_space<vmem>>) attributes {dimension_semantics = [#tpu.dimension_semantics<parallel>, #tpu.dimension_semantics<parallel>], iteration_bounds = array<i64: 1, 1>, scalar_prefetch = 0 : i64, scratch_operands = 0 : i64, tpu.core_type = #tpu.core_type<tc>, window_params = [{transform_indices = @transform_0, window_bounds = array<i64: 32, 32>}, {transform_indices = @transform_1, window_bounds = array<i64: 32, 64>}, {transform_indices = @transform_2, window_bounds = array<i64: 1, 64>}, {transform_indices = @transform_3, window_bounds = array<i64: 32, 64>}]} {
    %c0 = arith.constant 0 : index
    %c0_0 = arith.constant 0 : index
    %0 = vector.load %arg2[%c0, %c0_0] : memref<32x32xf32, #tpu.memory_space<vmem>>, vector<32x32xf32>
    %c0_1 = arith.constant 0 : index
    %c0_2 = arith.constant 0 : index
    %1 = vector.load %arg3[%c0_1, %c0_2] : memref<32x64xf32, #tpu.memory_space<vmem>>, vector<32x64xf32>
    %cst = arith.constant dense<0.000000e+00> : vector<32x64xf32>
    %2 = tpu.matmul %0, %1, %cst {dimension_numbers = #tpu.dot_dimension_numbers<[1], [0], [0], [1], [0, 0, 1, 1], [], []>} : vector<32x32xf32>, vector<32x64xf32>, vector<32x64xf32> -> vector<32x64xf32>
    %c0_3 = arith.constant 0 : index
    %c0_4 = arith.constant 0 : index
    %3 = vector.load %arg4[%c0_3, %c0_4] : memref<1x64xf32, #tpu.memory_space<vmem>>, vector<1x64xf32>
    %4 = vector.broadcast %3 : vector<1x64xf32> to vector<32x64xf32>
    %5 = arith.addf %2, %4 : vector<32x64xf32>
    %c0_5 = arith.constant 0 : index
    %c0_6 = arith.constant 0 : index
    %6 = vector.load %arg5[%c0_5, %c0_6] : memref<32x64xf32, #tpu.memory_space<vmem>>, vector<32x64xf32>
    tpu.vector_store %arg5[%c0_5, %c0_6], %5 {strides = array<i32>} : memref<32x64xf32, #tpu.memory_space<vmem>>, vector<32x64xf32>,
    return
  }
  func.func @transform_0(%arg0: i32, %arg1: i32) -> (i32, i32) {
    %c0_i32 = arith.constant 0 : i32
    %c0_i32_0 = arith.constant 0 : i32
    return %arg0, %c0_i32 : i32, i32
  }
  func.func @transform_1(%arg0: i32, %arg1: i32) -> (i32, i32) {
    %c0_i32 = arith.constant 0 : i32
    %c0_i32_0 = arith.constant 0 : i32
    return %c0_i32, %arg1 : i32, i32
  }
  func.func @transform_2(%arg0: i32, %arg1: i32) -> (i32, i32) {
    %c0_i32 = arith.constant 0 : i32
    %c0_i32_0 = arith.constant 0 : i32
    return %c0_i32, %arg1 : i32, i32
  }
  func.func @transform_3(%arg0: i32, %arg1: i32) -> (i32, i32) {
    %c0_i32 = arith.constant 0 : i32
    return %arg0, %arg1 : i32, i32
  }
}

</mosaic_0001>

<llo_original>
// kernel: tpu_custom_call.1
$region0: #{tpu_custom_call.1}
  #allocation0 [shape = 'u32[]', space=smem, size = 0x4, offset = 0x4, fixed_abs, tag = 'smem constant byte address 0x4 - core index']
  #allocation1 [shape = 'u32[144,128]{1,0:T(1,128)}', space=vmem, size = 0x12000, scoped, tag = 'internal scratch']
  %s0 = inlined_call_operand.hbm [shape: f32[32,32], index: 0, kind: input, shape index: {}]
  %s1 = inlined_call_operand.hbm [shape: f32[32,64], index: 1, kind: input, shape index: {}]
  %s2 = inlined_call_operand.vmem [shape: f32[1,64], index: 2, kind: input, shape index: {}]
  %s3 = inlined_call_operand.hbm [shape: f32[32,64], index: 3, kind: output, shape index: {}]
  %s4 = sld [smem:[#allocation0]]
  $region30: #{tpu_custom_call.1} parent=0
    _
  %s6 = ssub.s32 1, %s4
  %s7 = scalar_select 0, %s6, %s4
  $region1: #{tpu_custom_call.1} parent=0
    #allocation2 [shape = 'u8[16384]{0}', space=vmem, size = 0x4000, scoped, tag = 'input window, operand 0, single buffered']
    #allocation3 [shape = 's32[1]{0}', space=sflag, size = 0x4, scoped, tag = 'scoped memory for tpu_custom_call.1']
    #allocation4 [shape = 's32[1]{0}', space=sflag, size = 0x4, scoped, tag = 'scoped memory for tpu_custom_call.1']
    #allocation5 [shape = 'u8[16384]{0}', space=vmem, size = 0x4000, scoped, tag = 'input window, operand 1, single buffered']
    #allocation6 [shape = 's32[1]{0}', space=sflag, size = 0x4, scoped, tag = 'scoped memory for tpu_custom_call.1']
    #allocation7 [shape = 'u8[16384]{0}', space=vmem, size = 0x4000, scoped, tag = 'output window, operand 0, single buffered']
    %8 = vsyncpa [#allocation3], 0
    %9 = vsyncpa [#allocation6], 0
    %10 = vsyncpa [#allocation4], 0
    // Predicated region
    $region2: #{tpu_custom_call.1} parent=1 // pred_check
      _
    $region3: #{tpu_custom_call.1} parent=1 // pred_check_branch
      %12 = sbr.rel (0) target = $region5
    $region4: #{tpu_custom_call.1} parent=1 // pred_region
      %s14 = ssub.s32 512, 512
      %15 = vsyncadd [#allocation3], %s14
      %s16 = sshll.u32 [#allocation2], 4
      %s17 = int_to_ptr.vmem [resolvable:$true] %s16
      %22 = dma.hbm_to_vmem [thread:$0]  %s0, 512, %s17, [#allocation3], 128, 128, 8
    $region5: #{tpu_custom_call.1} parent=1 // pred_fallthru
      _
    // Predicated region
    $region6: #{tpu_custom_call.1} parent=1 // pred_check
      _
    $region7: #{tpu_custom_call.1} parent=1 // pred_check_branch
      %24 = sbr.rel (0) target = $region9
    $region8: #{tpu_custom_call.1} parent=1 // pred_region
      %s26 = ssub.s32 512, 512
      %27 = vsyncadd [#allocation6], %s26
      %s28 = sshll.u32 [#allocation5], 4
      %s29 = int_to_ptr.vmem [resolvable:$true] %s28
      %34 = dma.hbm_to_vmem [thread:$0]  %s1, 512, %s29, [#allocation6], 128, 128, 8
    $region9: #{tpu_custom_call.1} parent=1 // pred_fallthru
      _
    // Predicated region
    $region10: #{tpu_custom_call.1} parent=1 // pred_check
      _
    $region11: #{tpu_custom_call.1} parent=1 // pred_check_branch
      %36 = sbr.rel (0) target = $region13
    $region12: #{tpu_custom_call.1} parent=1 // pred_region
      _
    $region13: #{tpu_custom_call.1} parent=1 // pred_fallthru
      _
    // Predicated region
    $region14: #{tpu_custom_call.1} parent=1 // pred_check
      _
    $region15: #{tpu_custom_call.1} parent=1 // pred_check_branch
      %38 = sbr.rel (0) target = $region17
    $region16: #{tpu_custom_call.1} parent=1 // pred_region
      %39 = dma.done [#allocation3], 512
    $region17: #{tpu_custom_call.1} parent=1 // pred_fallthru
      _
    // Predicated region
    $region18: #{tpu_custom_call.1} parent=1 // pred_check
      _
    $region19: #{tpu_custom_call.1} parent=1 // pred_check_branch
      %41 = sbr.rel (0) target = $region21
    $region20: #{tpu_custom_call.1} parent=1 // pred_region
      %42 = dma.done [#allocation6], 512
    $region21: #{tpu_custom_call.1} parent=1 // pred_fallthru
      _
    %v43 = vld [vmem:[#allocation2] sm:$0xff]
    %v44 = vld [vmem:[#allocation2 + $0x8] sm:$0xff]
    %v45 = vld [vmem:[#allocation2 + $0x10] sm:$0xff]
    %v46 = vld [vmem:[#allocation2 + $0x18] sm:$0xff]
    %v47 = vld [vmem:[#allocation5] sm:$0xff]
    %v48 = vld [vmem:[#allocation5 + $0x8] sm:$0xff]
    %v49 = vld [vmem:[#allocation5 + $0x10] sm:$0xff]
    %v50 = vld [vmem:[#allocation5 + $0x18] sm:$0xff]
    %v51 = vld [vmem:[%s2] sm:$0x1]
    %v53 = vlaneseq
    %v54 = vshrl.u32 %v53, 7
    %v55 = vsub.s32 0, %v54
    %v56 = vrot.slane %v51, %v55
    %vm58 = vcmask 261120
    %v60 = vsel %vm58, %v43, 0
    %v63 = vsel %vm58, %v44, 0
    %v66 = vsel %vm58, %v45, 0
    %v69 = vsel %vm58, %v46, 0
    %71 = vmatprep.subr.mxu0 0.0
    %72 = vmatpush1.msra.mxu0 %v47
    %73 = vmatprep.subr.mxu0 0.0
    %74 = vmatpush1.msra.mxu0 %v48
    %75 = vmatprep.subr.mxu0 0.0
    %76 = vmatpush1.msra.mxu0 %v49
    %77 = vmatprep.subr.mxu0 0.0
    %78 = vmatpush1.msra.mxu0 %v50
    %79 = vmatprep.subr.mxu0 0.0
    %80 = vmatpush1.msra.mxu0 0.0
    %81 = vmatprep.subr.mxu0 0.0
    %82 = vmatpush1.msra.mxu0 0.0
    %83 = vmatprep.subr.mxu0 0.0
    %84 = vmatpush1.msra.mxu0 0.0
    %85 = vmatprep.subr.mxu0 0.0
    %86 = vmatpush1.msra.mxu0 0.0
    %87 = vmatprep.subr.mxu0 0.0
    %88 = vmatpush1.msra.mxu0 0.0
    %89 = vmatprep.subr.mxu0 0.0
    %90 = vmatpush1.msra.mxu0 0.0
    %91 = vmatprep.subr.mxu0 0.0
    %92 = vmatpush1.msra.mxu0 0.0
    %93 = vmatprep.subr.mxu0 0.0
    %94 = vmatpush1.msra.mxu0 0.0
    %95 = vmatprep.subr.mxu0 0.0
    %96 = vmatpush1.msra.mxu0 0.0
    %97 = vmatprep.subr.mxu0 0.0
    %98 = vmatpush1.msra.mxu0 0.0
    %99 = vmatprep.subr.mxu0 0.0
    %100 = vmatpush1.msra.mxu0 0.0
    %101 = vmatprep.subr.mxu0 0.0
    %102 = vmatpush1.msra.mxu0 0.0
    %103 = vmatprep.subr.mxu0 0.0
    %104 = vmatpush1.msra.mxu0 0.0
    %105 = vmatprep.subr.mxu0 0.0
    %106 = vmatpush1.msra.mxu0 0.0
    %107 = vmatprep.subr.mxu0 0.0
    %108 = vmatpush1.msra.mxu0 0.0
    %109 = vmatprep.subr.mxu0 0.0
    %110 = vmatpush1.msra.mxu0 0.0
    %111 = vmatprep.subr.mxu0 0.0
    %112 = vmatpush1.msra.mxu0 0.0
    %113 = vmatprep.subr.mxu0 0.0
    %114 = vmatpush1.msra.mxu0 0.0
    %115 = vmatprep.subr.mxu0 0.0
    %116 = vmatpush1.msra.mxu0 0.0
    %117 = vmatprep.subr.mxu0 0.0
    %118 = vmatpush1.msra.mxu0 0.0
    %119 = vmatprep.subr.mxu0 0.0
    %120 = vmatpush1.msra.mxu0 0.0
    %121 = vmatprep.subr.mxu0 0.0
    %122 = vmatpush1.msra.mxu0 0.0
    %123 = vmatprep.subr.mxu0 0.0
    %124 = vmatpush1.msra.mxu0 0.0
    %125 = vmatprep.subr.mxu0 0.0
    %126 = vmatpush1.msra.mxu0 0.0
    %127 = vmatprep.subr.mxu0 0.0
    %128 = vmatpush1.msra.mxu0 0.0
    %129 = vmatprep.subr.mxu0 0.0
    %130 = vmatpush1.msra.mxu0 0.0
    %131 = vmatprep.subr.mxu0 0.0
    %132 = vmatpush1.msra.mxu0 0.0
    %133 = vmatprep.subr.mxu0 0.0
    %134 = vmatpush1.msra.mxu0 0.0
    %135 = vmatprep.mubr.f32.mxu0 0.0
    %136 = vmatmul.mubr.f32.gmra.mrb[0].mxu0 %v60
    %v137 = vpop.f32.mrb[0].mxu0
    %v138 = vadd.f32 %v56, %v137
    %v139 = vpop.f32.mrb[0].mxu0
    %140 = vmatprep.mubr.f32.mxu0 0.0
    %141 = vmatmul.mubr.f32.gmra.mrb[0].mxu0 %v63
    %v142 = vpop.f32.mrb[0].mxu0
    %v143 = vadd.f32 %v56, %v142
    %v144 = vpop.f32.mrb[0].mxu0
    %145 = vmatprep.mubr.f32.mxu0 0.0
    %146 = vmatmul.mubr.f32.gmra.mrb[0].mxu0 %v66
    %v147 = vpop.f32.mrb[0].mxu0
    %v148 = vadd.f32 %v56, %v147
    %v149 = vpop.f32.mrb[0].mxu0
    %150 = vmatprep.mubr.f32.mxu0 0.0
    %151 = vmatmul.mubr.f32.gmra.mrb[0].mxu0 %v69
    %v152 = vpop.f32.mrb[0].mxu0
    %v153 = vadd.f32 %v56, %v152
    %v154 = vpop.f32.mrb[0].mxu0
    %155 = vdwg.mxu0
    %vm156 = vcmask 523264
    %157 = vst.msk [vmem:[#allocation7] sm:$0xff] %vm156, %v138
    %158 = vst.msk [vmem:[#allocation7 + $0x8] sm:$0xff] %vm156, %v143
    %159 = vst.msk [vmem:[#allocation7 + $0x10] sm:$0xff] %vm156, %v148
    %160 = vst.msk [vmem:[#allocation7 + $0x18] sm:$0xff] %vm156, %v153
    // Predicated region
    $region22: #{tpu_custom_call.1} parent=1 // pred_check
      _
    $region23: #{tpu_custom_call.1} parent=1 // pred_check_branch
      %162 = sbr.rel (0) target = $region25
    $region24: #{tpu_custom_call.1} parent=1 // pred_region
      %s164 = ssub.s32 512, 512
      %165 = vsyncadd [#allocation4], %s164
      %s166 = sshll.u32 [#allocation7], 4
      %s167 = int_to_ptr.vmem [resolvable:$true] %s166
      %172 = dma.vmem_to_hbm [thread:$0]  %s167, 512, %s3, [#allocation4], 128, 128, 8
    $region25: #{tpu_custom_call.1} parent=1 // pred_fallthru
      _
    // Predicated region
    $region26: #{tpu_custom_call.1} parent=1 // pred_check
      _
    $region27: #{tpu_custom_call.1} parent=1 // pred_check_branch
      %174 = sbr.rel (0) target = $region29
    $region28: #{tpu_custom_call.1} parent=1 // pred_region
      %175 = dma.done [#allocation4], 512
    $region29: #{tpu_custom_call.1} parent=1 // pred_fallthru
      _
    %176 = vsyncpa [#allocation3], 1
    %177 = vsyncpa [#allocation6], 1
    %178 = vsyncpa [#allocation4], 1

</llo_original>
